<compile_context>
chip_gen: v7x
topology: tpu7x:2x2x1
jax: 0.10.0
libtpu: 0.0.40
codegen_flags: <defaults>
</compile_context>

<pallas_src>
import math

import jax
import jax.numpy as jnp
from jax.experimental import pallas as pl
from jax.experimental.pallas import tpu as pltpu

FEAT = 1280          # MobileNetV2 feature width (each backbone output)
CAT = 2 * FEAT       # 2560 after torch.cat((x1, x2), 1)


# ----------------------------------------------------------------------------
# Pallas kernel: folded head
#   out = [x1 | x2] @ (Wfc^T @ Wfc1^T) + (bfc @ Wfc1^T + bfc1)
# computed as a VPU multiply + lane reduce (no MXU N=1 matmul, no K grid).
# ----------------------------------------------------------------------------
def _head_kernel(b_ref, x1_ref, x2_ref, w1_ref, w2_ref, out_ref):
    # x1/x2: (tb, 1280) activation tiles; w1/w2: (1, 1280) lane-dense folded
    # weight rows; b: (1,) scalar in SMEM.
    s = x1_ref[...] * w1_ref[...] + x2_ref[...] * w2_ref[...]       # (tb, 1280)
    out_ref[...] = jnp.sum(s, axis=1, keepdims=True) + b_ref[0]     # (tb, 1)


def net_head(x1, x2, w1_row, w2_row, b_comb, *, tb=256):
    """x1, x2: (B, 1280) f32; w*_row: (1, 1280); b_comb: (1,).  Returns (B, 1)."""
    B = x1.shape[0]
    if B <= tb:
        tb = B                       # single batch tile (block == full array dims)
    grid = (pl.cdiv(B, tb),)
    return pl.pallas_call(
        _head_kernel,
        out_shape=jax.ShapeDtypeStruct((B, 1), jnp.float32),
        grid=grid,
        in_specs=[
            pl.BlockSpec(memory_space=pltpu.MemorySpace.SMEM),   # folded bias scalar
            pl.BlockSpec((tb, FEAT), lambda i: (i, 0)),          # x1 batch tile
            pl.BlockSpec((tb, FEAT), lambda i: (i, 0)),          # x2 batch tile
            pl.BlockSpec((1, FEAT), lambda i: (0, 0)),           # folded weight row (x1 half)
            pl.BlockSpec((1, FEAT), lambda i: (0, 0)),           # folded weight row (x2 half)
        ],
        out_specs=pl.BlockSpec((tb, 1), lambda i: (i, 0)),
        compiler_params=pltpu.CompilerParams(
            dimension_semantics=("parallel",)),                  # batch tiles -> both v7x TCs
    )(b_comb, x1, x2, w1_row, w2_row)


# ----------------------------------------------------------------------------
# Deterministic parameter init (PyTorch nn.Linear default: U(-1/sqrt(fan_in), .))
# ----------------------------------------------------------------------------
def _linear_params(key, in_f, out_f):
    bound = 1.0 / math.sqrt(in_f)
    wk, bk = jax.random.split(key)
    w = jax.random.uniform(wk, (out_f, in_f), jnp.float32, -bound, bound)
    b = jax.random.uniform(bk, (out_f,), jnp.float32, -bound, bound)
    return w, b


def init_params(key):
    k_fc, k_fc1, k_pfc, k_pproj, k_iproj = jax.random.split(key, 5)
    w_fc, b_fc = _linear_params(k_fc, CAT, FEAT)          # self.fc : 2560 -> 1280
    w_fc1, b_fc1 = _linear_params(k_fc1, FEAT, 1)         # self.fc1: 1280 -> 1
    # parsing_net1.module.fc = nn.Linear(7, 7) (only explicitly specified layer
    # of the parsing backbone that we can honor)
    w_pfc, b_pfc = _linear_params(k_pfc, 7, 7)
    # TODO(synk): stand-in projection matrices for the unavailable backbones.
    w_pproj = jax.random.normal(k_pproj, (7 + 7, FEAT), jnp.float32) * 0.02
    w_iproj = jax.random.normal(k_iproj, (3, FEAT), jnp.float32) * 0.02
    return dict(w_fc=w_fc, b_fc=b_fc, w_fc1=w_fc1, b_fc1=b_fc1,
                w_pfc=w_pfc, b_pfc=b_pfc, w_pproj=w_pproj, w_iproj=w_iproj)


def fold_head_params(params):
    """One-time algebraic fold of fc followed by fc1 (exact: no nonlinearity
    between them in Net.forward).  Splits the combined (2560,) weight into the
    x1 / x2 halves so the kernel never needs the concatenated activation."""
    w_fc1_row = params["w_fc1"][0]                                  # (1280,)
    w_col = params["w_fc"].T @ w_fc1_row                            # (2560,)
    b = jnp.dot(params["b_fc"], w_fc1_row) + params["b_fc1"]        # (1,)
    return dict(params,
                w1_row=w_col[:FEAT][None, :].astype(jnp.float32),   # (1, 1280)
                w2_row=w_col[FEAT:][None, :].astype(jnp.float32),   # (1, 1280)
                b_comb=b.astype(jnp.float32))                       # (1,)


# ----------------------------------------------------------------------------
# Backbone stand-ins (glue; not the Pallas hot path)
# ----------------------------------------------------------------------------
def parsing_net1_stub(parsing, inputs2, params):
    # TODO(synk): MV2_cattn source unavailable; GAP + Linear(7,7) on inputs2 +
    # fixed projection to 1280 reproduces only the output shape.
    gap = jnp.mean(parsing, axis=(2, 3))                             # (B, 7)
    aux = inputs2 @ params["w_pfc"].T + params["b_pfc"]              # (B, 7)
    return jnp.concatenate([gap, aux], axis=1) @ params["w_pproj"]   # (B, 1280)


def image_net1_stub(image, params):
    # TODO(synk): MV2attn source unavailable; GAP + fixed projection to 1280.
    gap = jnp.mean(image, axis=(2, 3))                               # (B, 3)
    return gap @ params["w_iproj"]                                   # (B, 1280)


def net_forward(image, parsing, inputs2, params):
    x1 = parsing_net1_stub(parsing, inputs2, params)                 # (B, 1280)
    x2 = image_net1_stub(image, params)                              # (B, 1280)
    return net_head(x1, x2, params["w1_row"], params["w2_row"], params["b_comb"])


# ----------------------------------------------------------------------------
if __name__ == "__main__":
    key = jax.random.PRNGKey(0)
    k_img, k_par, k_in2, k_params = jax.random.split(key, 4)

    B = 2
    image = jax.random.normal(k_img, (B, 3, 32, 32), jnp.float32)     # NCHW
    parsing = jax.random.normal(k_par, (B, 7, 32, 32), jnp.float32)   # NCHW
    inputs2 = jax.random.normal(k_in2, (B, 7), jnp.float32)

    params = fold_head_params(init_params(k_params))

    out = net_forward(image, parsing, inputs2, params)
    out = jax.block_until_ready(out)

    # Reference check against the ORIGINAL (unfolded) Net head math in plain JAX:
    #   x = cat((x1, x2), 1); x = fc(x); out = fc1(x)
    x1 = parsing_net1_stub(parsing, inputs2, params)
    x2 = image_net1_stub(image, params)
    xcat = jnp.concatenate([x1, x2], axis=1)
    ref = (xcat @ params["w_fc"].T + params["b_fc"]) @ params["w_fc1"].T + params["b_fc1"]
    assert out.shape == (B, 1)
    assert jnp.allclose(out, ref, atol=1e-3, rtol=1e-3)

    print("KERNEL_OK")
</pallas_src>

<mosaic_0001>
module attributes {stable_mosaic.version = 11 : i64} {
  func.func @_head_kernel(%arg0: i32, %arg1: memref<1xf32, #tpu.memory_space<smem>>, %arg2: memref<2x1280xf32, #tpu.memory_space<vmem>>, %arg3: memref<2x1280xf32, #tpu.memory_space<vmem>>, %arg4: memref<1x1280xf32, #tpu.memory_space<vmem>>, %arg5: memref<1x1280xf32, #tpu.memory_space<vmem>>, %arg6: memref<2x1xf32, #tpu.memory_space<vmem>>) attributes {dimension_semantics = [#tpu.dimension_semantics<parallel>], iteration_bounds = array<i64: 1>, scalar_prefetch = 0 : i64, scratch_operands = 0 : i64, tpu.core_type = #tpu.core_type<tc>, window_params = [{transform_indices = @transform_0, window_bounds = array<i64: 1>}, {transform_indices = @transform_1, window_bounds = array<i64: 2, 1280>}, {transform_indices = @transform_2, window_bounds = array<i64: 2, 1280>}, {pipeline_mode = #tpu.pipeline_mode<synchronous>, transform_indices = @transform_3, window_bounds = array<i64: 1, 1280>}, {pipeline_mode = #tpu.pipeline_mode<synchronous>, transform_indices = @transform_4, window_bounds = array<i64: 1, 1280>}, {transform_indices = @transform_5, window_bounds = array<i64: 2, 1>}]} {
    %c0 = arith.constant 0 : index
    %c0_0 = arith.constant 0 : index
    %0 = vector.load %arg2[%c0, %c0_0] : memref<2x1280xf32, #tpu.memory_space<vmem>>, vector<2x1280xf32>
    %c0_1 = arith.constant 0 : index
    %c0_2 = arith.constant 0 : index
    %1 = vector.load %arg4[%c0_1, %c0_2] : memref<1x1280xf32, #tpu.memory_space<vmem>>, vector<1x1280xf32>
    %2 = vector.broadcast %1 : vector<1x1280xf32> to vector<2x1280xf32>
    %3 = arith.mulf %0, %2 : vector<2x1280xf32>
    %c0_3 = arith.constant 0 : index
    %c0_4 = arith.constant 0 : index
    %4 = vector.load %arg3[%c0_3, %c0_4] : memref<2x1280xf32, #tpu.memory_space<vmem>>, vector<2x1280xf32>
    %c0_5 = arith.constant 0 : index
    %c0_6 = arith.constant 0 : index
    %5 = vector.load %arg5[%c0_5, %c0_6] : memref<1x1280xf32, #tpu.memory_space<vmem>>, vector<1x1280xf32>
    %6 = vector.broadcast %5 : vector<1x1280xf32> to vector<2x1280xf32>
    %7 = arith.mulf %4, %6 : vector<2x1280xf32>
    %8 = arith.addf %3, %7 : vector<2x1280xf32>
    %cst = arith.constant dense<0.000000e+00> : vector<2xf32>
    %9 = vector.multi_reduction <add>, %8, %cst [1] : vector<2x1280xf32> to vector<2xf32>
    %10 = vector.shape_cast %9 : vector<2xf32> to vector<2x1xf32>
    %c0_7 = arith.constant 0 : index
    %11 = memref.load %arg1[%c0_7] : memref<1xf32, #tpu.memory_space<smem>>
    %12 = vector.broadcast %11 : f32 to vector<2x1xf32>
    %13 = arith.addf %10, %12 : vector<2x1xf32>
    %c0_8 = arith.constant 0 : index
    %c0_9 = arith.constant 0 : index
    %14 = vector.load %arg6[%c0_8, %c0_9] : memref<2x1xf32, #tpu.memory_space<vmem>>, vector<2x1xf32>
    tpu.vector_store %arg6[%c0_8, %c0_9], %13 {strides = array<i32>} : memref<2x1xf32, #tpu.memory_space<vmem>>, vector<2x1xf32>,
    return
  }
  func.func @transform_0(%arg0: i32) -> i32 {
    %c0_i32 = arith.constant 0 : i32
    %c0_i32_0 = arith.constant 0 : i32
    return %c0_i32 : i32
  }
  func.func @transform_1(%arg0: i32) -> (i32, i32) {
    %c0_i32 = arith.constant 0 : i32
    %c0_i32_0 = arith.constant 0 : i32
    return %arg0, %c0_i32 : i32, i32
  }
  func.func @transform_2(%arg0: i32) -> (i32, i32) {
    %c0_i32 = arith.constant 0 : i32
    %c0_i32_0 = arith.constant 0 : i32
    return %arg0, %c0_i32 : i32, i32
  }
  func.func @transform_3(%arg0: i32) -> (i32, i32) {
    %c0_i32 = arith.constant 0 : i32
    %c0_i32_0 = arith.constant 0 : i32
    %c0_i32_1 = arith.constant 0 : i32
    return %c0_i32, %c0_i32_0 : i32, i32
  }
  func.func @transform_4(%arg0: i32) -> (i32, i32) {
    %c0_i32 = arith.constant 0 : i32
    %c0_i32_0 = arith.constant 0 : i32
    %c0_i32_1 = arith.constant 0 : i32
    return %c0_i32, %c0_i32_0 : i32, i32
  }
  func.func @transform_5(%arg0: i32) -> (i32, i32) {
    %c0_i32 = arith.constant 0 : i32
    %c0_i32_0 = arith.constant 0 : i32
    return %arg0, %c0_i32 : i32, i32
  }
}

</mosaic_0001>

<llo_original>
// kernel: tpu_custom_call.1
$region0: #{tpu_custom_call.1}
  #allocation0 [shape = 'u32[]', space=smem, size = 0x4, offset = 0x4, fixed_abs, tag = 'smem constant byte address 0x4 - core index']
  #allocation1 [shape = 'u32[144,128]{1,0:T(1,128)}', space=vmem, size = 0x12000, scoped, tag = 'internal scratch']
  #allocation2 [shape = 'f32[1]{0:T(128)S(6)}', space=smem, size = 0x200, scoped, tag = 'scoped memory for tpu_custom_call.1']
  %s0 = inlined_call_operand.<no memory space> [shape: f32[1], index: 0, kind: input, shape index: {}]
  %s1 = inlined_call_operand.hbm [shape: f32[2,1280], index: 1, kind: input, shape index: {}]
  %s2 = inlined_call_operand.hbm [shape: f32[2,1280], index: 2, kind: input, shape index: {}]
  %s3 = inlined_call_operand.vmem [shape: f32[1,1280], index: 3, kind: input, shape index: {}]
  %s4 = inlined_call_operand.hbm [shape: f32[1,1280], index: 4, kind: input, shape index: {}]
  %s5 = inlined_call_operand.vmem [shape: f32[2,1], index: 5, kind: output, shape index: {}]
  %s6 = sld [smem:[#allocation0]]
  $region42: #{tpu_custom_call.1} parent=0
    _
  %s8 = ssub.s32 1, %s6
  %s9 = scalar_select 0, %s8, %s6
  %10 = sst [smem:[#allocation2]] %s0
  $region1: #{tpu_custom_call.1} parent=0
    #allocation3 [shape = 'u8[10240]{0}', space=vmem, size = 0x2800, scoped, tag = 'input window, operand 1, single buffered']
    #allocation4 [shape = 's32[1]{0}', space=sflag, size = 0x4, scoped, tag = 'scoped memory for tpu_custom_call.1']
    #allocation5 [shape = 'u8[10240]{0}', space=vmem, size = 0x2800, scoped, tag = 'input window, operand 2, single buffered']
    #allocation6 [shape = 's32[1]{0}', space=sflag, size = 0x4, scoped, tag = 'scoped memory for tpu_custom_call.1']
    #allocation7 [shape = 'u8[5120]{0}', space=vmem, size = 0x1400, scoped, tag = 'input window, operand 4, single buffered']
    %11 = vsyncpa [#allocation4], 0
    %12 = vsyncpa [#allocation6], 0
    // Predicated region
    $region2: #{tpu_custom_call.1} parent=1 // pred_check
      _
    $region3: #{tpu_custom_call.1} parent=1 // pred_check_branch
      %14 = sbr.rel (0) target = $region5
    $region4: #{tpu_custom_call.1} parent=1 // pred_region
      _
    $region5: #{tpu_custom_call.1} parent=1 // pred_fallthru
      _
    // Predicated region
    $region6: #{tpu_custom_call.1} parent=1 // pred_check
      _
    $region7: #{tpu_custom_call.1} parent=1 // pred_check_branch
      %16 = sbr.rel (0) target = $region9
    $region8: #{tpu_custom_call.1} parent=1 // pred_region
      %s18 = ssub.s32 320, 320
      %19 = vsyncadd [#allocation4], %s18
      %s21 = sshll.u32 [#allocation3], 4
      %s22 = int_to_ptr.vmem [resolvable:$true] %s21
      %24 = dma.hbm_to_vmem [thread:$0]  %s1, 320, %s22, [#allocation4]
    $region9: #{tpu_custom_call.1} parent=1 // pred_fallthru
      _
    // Predicated region
    $region10: #{tpu_custom_call.1} parent=1 // pred_check
      _
    $region11: #{tpu_custom_call.1} parent=1 // pred_check_branch
      %26 = sbr.rel (0) target = $region13
    $region12: #{tpu_custom_call.1} parent=1 // pred_region
      %s28 = ssub.s32 320, 320
      %29 = vsyncadd [#allocation6], %s28
      %s31 = sshll.u32 [#allocation5], 4
      %s32 = int_to_ptr.vmem [resolvable:$true] %s31
      %34 = dma.hbm_to_vmem [thread:$0]  %s2, 320, %s32, [#allocation6]
    $region13: #{tpu_custom_call.1} parent=1 // pred_fallthru
      _
    // Predicated region
    $region14: #{tpu_custom_call.1} parent=1 // pred_check
      _
    $region15: #{tpu_custom_call.1} parent=1 // pred_check_branch
      %36 = sbr.rel (0) target = $region17
    $region16: #{tpu_custom_call.1} parent=1 // pred_region
      _
    $region17: #{tpu_custom_call.1} parent=1 // pred_fallthru
      _
    // Predicated region
    $region18: #{tpu_custom_call.1} parent=1 // pred_check
      _
    $region19: #{tpu_custom_call.1} parent=1 // pred_check_branch
      %38 = sbr.rel (0) target = $region21
    $region20: #{tpu_custom_call.1} parent=1 // pred_region
      %s40 = ssub.s32 160, 160
      %41 = vsyncadd [#allocation6], %s40
      %s43 = sshll.u32 [#allocation7], 4
      %s44 = int_to_ptr.vmem [resolvable:$true] %s43
      %46 = dma.hbm_to_vmem [thread:$0]  %s4, 160, %s44, [#allocation6]
    $region21: #{tpu_custom_call.1} parent=1 // pred_fallthru
      _
    // Predicated region
    $region22: #{tpu_custom_call.1} parent=1 // pred_check
      _
    $region23: #{tpu_custom_call.1} parent=1 // pred_check_branch
      %48 = sbr.rel (0) target = $region25
    $region24: #{tpu_custom_call.1} parent=1 // pred_region
      %49 = dma.done [#allocation4], 320
    $region25: #{tpu_custom_call.1} parent=1 // pred_fallthru
      _
    // Predicated region
    $region26: #{tpu_custom_call.1} parent=1 // pred_check
      _
    $region27: #{tpu_custom_call.1} parent=1 // pred_check_branch
      %51 = sbr.rel (0) target = $region29
    $region28: #{tpu_custom_call.1} parent=1 // pred_region
      %52 = dma.done [#allocation6], 320
    $region29: #{tpu_custom_call.1} parent=1 // pred_fallthru
      _
    // Predicated region
    $region30: #{tpu_custom_call.1} parent=1 // pred_check
      _
    $region31: #{tpu_custom_call.1} parent=1 // pred_check_branch
      %54 = sbr.rel (0) target = $region33
    $region32: #{tpu_custom_call.1} parent=1 // pred_region
      %55 = dma.done [#allocation6], 160
    $region33: #{tpu_custom_call.1} parent=1 // pred_fallthru
      _
    %v56 = vld [vmem:[#allocation3] sm:$0xff]
    %v57 = vld [vmem:[#allocation3 + $0x8] sm:$0xff]
    %v58 = vld [vmem:[#allocation3 + $0x10] sm:$0xf]
    %v59 = vld [vmem:[%s3] sm:$0xff]
    %v60 = vld [vmem:[%s3 + $0x8] sm:$0x3]
    %v63 = vlaneseq
    %v64 = vshrl.u32 %v63, 7
    %v65 = vsub.s32 0, %v64
    %v66 = vrot.slane %v59, %v65
    %v67 = vlaneseq
    %v68 = vshrl.u32 %v67, 7
    %v69 = vsub.s32 1, %v68
    %v70 = vrot.slane %v59, %v69
    %v71 = vlaneseq
    %v72 = vshrl.u32 %v71, 7
    %v73 = vsub.s32 2, %v72
    %v74 = vrot.slane %v59, %v73
    %v75 = vlaneseq
    %v76 = vshrl.u32 %v75, 7
    %v77 = vsub.s32 3, %v76
    %v78 = vrot.slane %v59, %v77
    %v79 = vlaneseq
    %v80 = vshrl.u32 %v79, 7
    %v81 = vsub.s32 4, %v80
    %v82 = vrot.slane %v59, %v81
    %v83 = vlaneseq
    %v84 = vshrl.u32 %v83, 7
    %v85 = vsub.s32 5, %v84
    %v86 = vrot.slane %v59, %v85
    %v87 = vlaneseq
    %v88 = vshrl.u32 %v87, 7
    %v89 = vsub.s32 6, %v88
    %v90 = vrot.slane %v59, %v89
    %v91 = vlaneseq
    %v92 = vshrl.u32 %v91, 7
    %v93 = vsub.s32 7, %v92
    %v94 = vrot.slane %v59, %v93
    %v95 = vlaneseq
    %v96 = vshrl.u32 %v95, 7
    %v97 = vsub.s32 0, %v96
    %v98 = vrot.slane %v60, %v97
    %v99 = vlaneseq
    %v100 = vshrl.u32 %v99, 7
    %v101 = vsub.s32 1, %v100
    %v102 = vrot.slane %v60, %v101
    %v103 = vcombine.low %v66, %v70
    %v104 = vcombine.low %v74, %v78
    %v106 = vunpack.c.l.s4 1983009808
    %v107 = vunpack.c.0.s8 %v106
    %v108 = vlaneseq
    %v109 = vshrl.u32 %v108, 7
    %v110 = vsub.s32 %v107, %v109
    %v111 = vrot.slane %v103, %v110
    %v113 = vunpack.c.l.s4 1983009808
    %v114 = vunpack.c.0.s8 %v113
    %v115 = vlaneseq
    %v116 = vshrl.u32 %v115, 7
    %v117 = vsub.s32 %v114, %v116
    %v118 = vrot.slane %v104, %v117
    %v119 = vcombine.low %v111, %v118
    %v120 = vcombine.low %v82, %v86
    %v121 = vcombine.low %v90, %v94
    %v123 = vunpack.c.l.s4 1983009808
    %v124 = vunpack.c.0.s8 %v123
    %v125 = vlaneseq
    %v126 = vshrl.u32 %v125, 7
    %v127 = vsub.s32 %v124, %v126
    %v128 = vrot.slane %v120, %v127
    %v130 = vunpack.c.l.s4 1983009808
    %v131 = vunpack.c.0.s8 %v130
    %v132 = vlaneseq
    %v133 = vshrl.u32 %v132, 7
    %v134 = vsub.s32 %v131, %v133
    %v135 = vrot.slane %v121, %v134
    %v136 = vcombine.low %v128, %v135
    %v137 = vcombine.low %v98, %v102
    %v139 = vunpack.c.l.s4 1983009808
    %v140 = vunpack.c.0.s8 %v139
    %v141 = vlaneseq
    %v142 = vshrl.u32 %v141, 7
    %v143 = vsub.s32 %v140, %v142
    %v144 = vrot.slane %v137, %v143
    %v148 = vmul.f32 %v56, %v119
    %v149 = vmul.f32 %v57, %v136
    %v150 = vmul.f32 %v58, %v144
    %v151 = vld [vmem:[#allocation5] sm:$0xff]
    %v152 = vld [vmem:[#allocation5 + $0x8] sm:$0xff]
    %v153 = vld [vmem:[#allocation5 + $0x10] sm:$0xf]
    %v154 = vld [vmem:[#allocation7] sm:$0xff]
    %v155 = vld [vmem:[#allocation7 + $0x8] sm:$0x3]
    %v158 = vlaneseq
    %v159 = vshrl.u32 %v158, 7
    %v160 = vsub.s32 0, %v159
    %v161 = vrot.slane %v154, %v160
    %v162 = vlaneseq
    %v163 = vshrl.u32 %v162, 7
    %v164 = vsub.s32 1, %v163
    %v165 = vrot.slane %v154, %v164
    %v166 = vlaneseq
    %v167 = vshrl.u32 %v166, 7
    %v168 = vsub.s32 2, %v167
    %v169 = vrot.slane %v154, %v168
    %v170 = vlaneseq
    %v171 = vshrl.u32 %v170, 7
    %v172 = vsub.s32 3, %v171
    %v173 = vrot.slane %v154, %v172
    %v174 = vlaneseq
    %v175 = vshrl.u32 %v174, 7
    %v176 = vsub.s32 4, %v175
    %v177 = vrot.slane %v154, %v176
    %v178 = vlaneseq
    %v179 = vshrl.u32 %v178, 7
    %v180 = vsub.s32 5, %v179
    %v181 = vrot.slane %v154, %v180
    %v182 = vlaneseq
    %v183 = vshrl.u32 %v182, 7
    %v184 = vsub.s32 6, %v183
    %v185 = vrot.slane %v154, %v184
    %v186 = vlaneseq
    %v187 = vshrl.u32 %v186, 7
    %v188 = vsub.s32 7, %v187
    %v189 = vrot.slane %v154, %v188
    %v190 = vlaneseq
    %v191 = vshrl.u32 %v190, 7
    %v192 = vsub.s32 0, %v191
    %v193 = vrot.slane %v155, %v192
    %v194 = vlaneseq
    %v195 = vshrl.u32 %v194, 7
    %v196 = vsub.s32 1, %v195
    %v197 = vrot.slane %v155, %v196
    %v198 = vcombine.low %v161, %v165
    %v199 = vcombine.low %v169, %v173
    %v201 = vunpack.c.l.s4 1983009808
    %v202 = vunpack.c.0.s8 %v201
    %v203 = vlaneseq
    %v204 = vshrl.u32 %v203, 7
    %v205 = vsub.s32 %v202, %v204
    %v206 = vrot.slane %v198, %v205
    %v208 = vunpack.c.l.s4 1983009808
    %v209 = vunpack.c.0.s8 %v208
    %v210 = vlaneseq
    %v211 = vshrl.u32 %v210, 7
    %v212 = vsub.s32 %v209, %v211
    %v213 = vrot.slane %v199, %v212
    %v214 = vcombine.low %v206, %v213
    %v215 = vcombine.low %v177, %v181
    %v216 = vcombine.low %v185, %v189
    %v218 = vunpack.c.l.s4 1983009808
    %v219 = vunpack.c.0.s8 %v218
    %v220 = vlaneseq
    %v221 = vshrl.u32 %v220, 7
    %v222 = vsub.s32 %v219, %v221
    %v223 = vrot.slane %v215, %v222
    %v225 = vunpack.c.l.s4 1983009808
    %v226 = vunpack.c.0.s8 %v225
    %v227 = vlaneseq
    %v228 = vshrl.u32 %v227, 7
    %v229 = vsub.s32 %v226, %v228
    %v230 = vrot.slane %v216, %v229
    %v231 = vcombine.low %v223, %v230
    %v232 = vcombine.low %v193, %v197
    %v234 = vunpack.c.l.s4 1983009808
    %v235 = vunpack.c.0.s8 %v234
    %v236 = vlaneseq
    %v237 = vshrl.u32 %v236, 7
    %v238 = vsub.s32 %v235, %v237
    %v239 = vrot.slane %v232, %v238
    %v243 = vmul.f32 %v151, %v214
    %v244 = vmul.f32 %v152, %v231
    %v245 = vmul.f32 %v153, %v239
    %v246 = vadd.f32 %v148, %v243
    %v247 = vadd.f32 %v149, %v244
    %v248 = vadd.f32 %v150, %v245
    %v252 = vcombine.high %v246, %v246
    %v254 = vunpack.c.l.s4 1983009808
    %v255 = vunpack.c.0.s8 %v254
    %v256 = vlaneseq
    %v257 = vshrl.u32 %v256, 7
    %v258 = vsub.s32 %v255, %v257
    %v259 = vrot.slane %v246, %v258
    %v261 = vunpack.c.l.s4 1983009808
    %v262 = vunpack.c.0.s8 %v261
    %v263 = vlaneseq
    %v264 = vshrl.u32 %v263, 7
    %v265 = vsub.s32 %v262, %v264
    %v266 = vrot.slane %v252, %v265
    %v267 = vcombine.high %v259, %v259
    %v268 = vcombine.high %v266, %v266
    %v269 = vcombine.high %v247, %v247
    %v271 = vunpack.c.l.s4 1983009808
    %v272 = vunpack.c.0.s8 %v271
    %v273 = vlaneseq
    %v274 = vshrl.u32 %v273, 7
    %v275 = vsub.s32 %v272, %v274
    %v276 = vrot.slane %v247, %v275
    %v278 = vunpack.c.l.s4 1983009808
    %v279 = vunpack.c.0.s8 %v278
    %v280 = vlaneseq
    %v281 = vshrl.u32 %v280, 7
    %v282 = vsub.s32 %v279, %v281
    %v283 = vrot.slane %v269, %v282
    %v284 = vcombine.high %v276, %v276
    %v285 = vcombine.high %v283, %v283
    %v287 = vunpack.c.l.s4 1983009808
    %v288 = vunpack.c.0.s8 %v287
    %v289 = vlaneseq
    %v290 = vshrl.u32 %v289, 7
    %v291 = vsub.s32 %v288, %v290
    %v292 = vrot.slane %v248, %v291
    %v293 = vcombine.high %v292, %v292
    %vm304 = vcmask 1041408
    %v305 = vsel %vm304, %v259, 0.0
    %v306 = vsel %vm304, %v267, 0.0
    %v307 = vadd.f32 %v305, %v306
    %v308 = vsel %vm304, %v266, 0.0
    %v309 = vadd.f32 %v307, %v308
    %v310 = vsel %vm304, %v268, 0.0
    %v311 = vadd.f32 %v309, %v310
    %v312 = vsel %vm304, %v276, 0.0
    %v313 = vadd.f32 %v311, %v312
    %v314 = vsel %vm304, %v284, 0.0
    %v315 = vadd.f32 %v313, %v314
    %v316 = vsel %vm304, %v283, 0.0
    %v317 = vadd.f32 %v315, %v316
    %v318 = vsel %vm304, %v285, 0.0
    %v319 = vadd.f32 %v317, %v318
    %v320 = vsel %vm304, %v292, 0.0
    %v321 = vadd.f32 %v319, %v320
    %v322 = vsel %vm304, %v293, 0.0
    %v323 = vadd.f32 %v321, %v322
    %324 = vadd.xlane.f32.xlu0 %v323
    %v325 = vpop.xlane.xlu0 %324
    %s326 = sld [smem:[#allocation2]]
    %v327 = vstv %s326
    %v328 = vadd.f32 %v325, %v327
    %vm329 = vcmask 1024
    %330 = vst.msk [vmem:[%s5] sm:$0x3] %vm329, %v328
    // Predicated region
    $region34: #{tpu_custom_call.1} parent=1 // pred_check
      _
    $region35: #{tpu_custom_call.1} parent=1 // pred_check_branch
      %332 = sbr.rel (0) target = $region37
    $region36: #{tpu_custom_call.1} parent=1 // pred_region
      _
    $region37: #{tpu_custom_call.1} parent=1 // pred_fallthru
      _
    // Predicated region
    $region38: #{tpu_custom_call.1} parent=1 // pred_check
      _
    $region39: #{tpu_custom_call.1} parent=1 // pred_check_branch
      %334 = sbr.rel (0) target = $region41
    $region40: #{tpu_custom_call.1} parent=1 // pred_region
      _
    $region41: #{tpu_custom_call.1} parent=1 // pred_fallthru
      _
    %335 = vsyncpa [#allocation4], 1
    %336 = vsyncpa [#allocation6], 1

</llo_original>
